<compile_context>
chip_gen: v7x
topology: tpu7x:2x2x1
jax: 0.10.0
libtpu: 0.0.40
codegen_flags: <defaults>
</compile_context>

<pallas_src>
import jax
import jax.numpy as jnp
from jax.experimental import pallas as pl
from jax.experimental.pallas import tpu as pltpu


def _round_up(n: int, m: int) -> int:
    return ((n + m - 1) // m) * m


def mlp_kernel(x_ref, w1_ref, b1_ref, w2_ref, b2_ref, o_ref):
    # x_ref:  (1, BN)   batch on lanes (lane-dense)
    # w1_ref: (H, 1)    fc1 weight, features on sublanes
    # b1_ref: (H, 1)    fc1 bias
    # w2_ref: (H, 1)    fc2 weight (transposed), features on sublanes
    # b2_ref: (1, 1)    fc2 bias, SMEM scalar
    # o_ref:  (1, BN)   batch on lanes (lane-dense store)
    x = x_ref[...]                                             # (1, BN)
    # fc1 + ReLU: pure VPU broadcast ops, no MXU push/pop.
    h = jnp.maximum(w1_ref[...] * x + b1_ref[...], 0.0)        # (H, BN)
    # fc2: VPU multiply + sublane reduction over the feature axis.
    y = jnp.sum(h * w2_ref[...], axis=0, keepdims=True)        # (1, BN)
    y = y + b2_ref[0, 0]                                       # scalar add from SMEM
    o_ref[...] = y.astype(o_ref.dtype)


def net_forward(x, fc1_w, fc1_b, fc2_w, fc2_b, *, batch_tile=512):
    """Fused forward pass of Net.

    x:      (B, 1) float
    fc1_w:  (128, 1)  torch fc1.weight layout (out_features, in_features)
    fc1_b:  (128,)    torch fc1.bias
    fc2_w:  (1, 128)  torch fc2.weight layout
    fc2_b:  (1,)      torch fc2.bias
    returns (B, 1) float32
    """
    assert batch_tile % 128 == 0
    B = x.shape[0]
    H = fc1_w.shape[0]  # 128 hidden features

    # Batch tile (lanes per grid step) and padded batch.
    BN = min(batch_tile, _round_up(max(B, 1), 128))
    Bp = _round_up(max(B, 1), BN)

    # Lane-dense input: batch along the lane (last) axis, zero-padded.
    x_lane = jnp.zeros((1, Bp), jnp.float32).at[0, :B].set(
        x.reshape(B).astype(jnp.float32))

    # Feature-on-sublane parameter layout (all f32).
    w1_k = fc1_w.reshape(H, 1).astype(jnp.float32)   # (H, 1)
    b1_k = fc1_b.reshape(H, 1).astype(jnp.float32)   # (H, 1)
    w2_k = fc2_w.reshape(H, 1).astype(jnp.float32)   # (H, 1)  == fc2_w.T
    b2_k = fc2_b.reshape(1, 1).astype(jnp.float32)   # (1, 1)  SMEM scalar

    grid = (Bp // BN,)

    y_lane = pl.pallas_call(
        mlp_kernel,
        out_shape=jax.ShapeDtypeStruct((1, Bp), jnp.float32),
        grid_spec=pltpu.PrefetchScalarGridSpec(
            num_scalar_prefetch=0,
            grid=grid,
            in_specs=[
                # x tile: one batch-tile of lanes per grid step.
                pl.BlockSpec((1, BN), lambda i: (0, i)),
                # Weights/bias: constant block index -> stay VMEM-resident.
                pl.BlockSpec((H, 1), lambda i: (0, 0)),
                pl.BlockSpec((H, 1), lambda i: (0, 0)),
                pl.BlockSpec((H, 1), lambda i: (0, 0)),
                # fc2 bias as a scalar in SMEM (avoids a padded VMEM tile).
                pl.BlockSpec(memory_space=pltpu.MemorySpace.SMEM),
            ],
            out_specs=pl.BlockSpec((1, BN), lambda i: (0, i)),
        ),
        compiler_params=pltpu.CompilerParams(
            dimension_semantics=("parallel",),  # batch axis shards across cores (v7x)
        ),
    )(x_lane, w1_k, b1_k, w2_k, b2_k)

    return y_lane[0, :B].reshape(B, 1)


def init_params(key):
    """PyTorch-style Linear init: U(-1/sqrt(fan_in), 1/sqrt(fan_in)), torch layouts."""
    k1, k2, k3, k4 = jax.random.split(key, 4)
    bound1 = 1.0 / jnp.sqrt(1.0)
    fc1_w = jax.random.uniform(k1, (128, 1), jnp.float32, -bound1, bound1)
    fc1_b = jax.random.uniform(k2, (128,), jnp.float32, -bound1, bound1)
    bound2 = 1.0 / jnp.sqrt(128.0)
    fc2_w = jax.random.uniform(k3, (1, 128), jnp.float32, -bound2, bound2)
    fc2_b = jax.random.uniform(k4, (1,), jnp.float32, -bound2, bound2)
    return fc1_w, fc1_b, fc2_w, fc2_b


if __name__ == "__main__":
    key = jax.random.PRNGKey(0)
    pkey, xkey = jax.random.split(key)
    fc1_w, fc1_b, fc2_w, fc2_b = init_params(pkey)

    B = 8  # small batch
    x = jax.random.normal(xkey, (B, 1), jnp.float32)

    y = net_forward(x, fc1_w, fc1_b, fc2_w, fc2_b)
    jax.block_until_ready(y)

    # Reference check in plain JAX (same math as the PyTorch module).
    h_ref = jnp.maximum(x @ fc1_w.T + fc1_b[None, :], 0.0)
    y_ref = h_ref @ fc2_w.T + fc2_b[None, :]
    assert y.shape == (B, 1)
    assert jnp.allclose(y, y_ref, atol=1e-5, rtol=1e-5)

    print("KERNEL_OK")
</pallas_src>

<mosaic_0001>
module attributes {stable_mosaic.version = 11 : i64} {
  func.func @mlp_kernel(%arg0: i32, %arg1: memref<1x128xf32, #tpu.memory_space<vmem>>, %arg2: memref<128x1xf32, #tpu.memory_space<vmem>>, %arg3: memref<128x1xf32, #tpu.memory_space<vmem>>, %arg4: memref<128x1xf32, #tpu.memory_space<vmem>>, %arg5: memref<1x1xf32, #tpu.memory_space<smem>>, %arg6: memref<1x128xf32, #tpu.memory_space<vmem>>) attributes {dimension_semantics = [#tpu.dimension_semantics<parallel>], iteration_bounds = array<i64: 1>, scalar_prefetch = 0 : i64, scratch_operands = 0 : i64, tpu.core_type = #tpu.core_type<tc>, window_params = [{transform_indices = @transform_0, window_bounds = array<i64: 1, 128>}, {pipeline_mode = #tpu.pipeline_mode<synchronous>, transform_indices = @transform_1, window_bounds = array<i64: 128, 1>}, {pipeline_mode = #tpu.pipeline_mode<synchronous>, transform_indices = @transform_2, window_bounds = array<i64: 128, 1>}, {pipeline_mode = #tpu.pipeline_mode<synchronous>, transform_indices = @transform_3, window_bounds = array<i64: 128, 1>}, {transform_indices = @transform_4, window_bounds = array<i64: 1, 1>}, {transform_indices = @transform_5, window_bounds = array<i64: 1, 128>}]} {
    %c0 = arith.constant 0 : index
    %c0_0 = arith.constant 0 : index
    %0 = vector.load %arg1[%c0, %c0_0] : memref<1x128xf32, #tpu.memory_space<vmem>>, vector<1x128xf32>
    %c0_1 = arith.constant 0 : index
    %c0_2 = arith.constant 0 : index
    %1 = vector.load %arg2[%c0_1, %c0_2] : memref<128x1xf32, #tpu.memory_space<vmem>>, vector<128x1xf32>
    %2 = vector.broadcast %1 : vector<128x1xf32> to vector<128x128xf32>
    %3 = vector.broadcast %0 : vector<1x128xf32> to vector<128x128xf32>
    %4 = arith.mulf %2, %3 : vector<128x128xf32>
    %c0_3 = arith.constant 0 : index
    %c0_4 = arith.constant 0 : index
    %5 = vector.load %arg3[%c0_3, %c0_4] : memref<128x1xf32, #tpu.memory_space<vmem>>, vector<128x1xf32>
    %6 = vector.broadcast %5 : vector<128x1xf32> to vector<128x128xf32>
    %7 = arith.addf %4, %6 : vector<128x128xf32>
    %cst = arith.constant 0.000000e+00 : f32
    %8 = vector.broadcast %cst : f32 to vector<128x128xf32>
    %9 = arith.maximumf %7, %8 : vector<128x128xf32>
    %c0_5 = arith.constant 0 : index
    %c0_6 = arith.constant 0 : index
    %10 = vector.load %arg4[%c0_5, %c0_6] : memref<128x1xf32, #tpu.memory_space<vmem>>, vector<128x1xf32>
    %11 = vector.broadcast %10 : vector<128x1xf32> to vector<128x128xf32>
    %12 = arith.mulf %9, %11 : vector<128x128xf32>
    %cst_7 = arith.constant dense<0.000000e+00> : vector<128xf32>
    %13 = vector.multi_reduction <add>, %12, %cst_7 [0] : vector<128x128xf32> to vector<128xf32>
    %14 = vector.shape_cast %13 : vector<128xf32> to vector<1x128xf32>
    %c0_8 = arith.constant 0 : index
    %c0_9 = arith.constant 0 : index
    %15 = memref.load %arg5[%c0_8, %c0_9] : memref<1x1xf32, #tpu.memory_space<smem>>
    %16 = vector.broadcast %15 : f32 to vector<1x128xf32>
    %17 = arith.addf %14, %16 : vector<1x128xf32>
    %c0_10 = arith.constant 0 : index
    %c0_11 = arith.constant 0 : index
    %18 = vector.load %arg6[%c0_10, %c0_11] : memref<1x128xf32, #tpu.memory_space<vmem>>, vector<1x128xf32>
    tpu.vector_store %arg6[%c0_10, %c0_11], %17 {strides = array<i32>} : memref<1x128xf32, #tpu.memory_space<vmem>>, vector<1x128xf32>,
    return
  }
  func.func @transform_0(%arg0: i32) -> (i32, i32) {
    %c0_i32 = arith.constant 0 : i32
    %c0_i32_0 = arith.constant 0 : i32
    return %c0_i32, %arg0 : i32, i32
  }
  func.func @transform_1(%arg0: i32) -> (i32, i32) {
    %c0_i32 = arith.constant 0 : i32
    %c0_i32_0 = arith.constant 0 : i32
    %c0_i32_1 = arith.constant 0 : i32
    return %c0_i32, %c0_i32_0 : i32, i32
  }
  func.func @transform_2(%arg0: i32) -> (i32, i32) {
    %c0_i32 = arith.constant 0 : i32
    %c0_i32_0 = arith.constant 0 : i32
    %c0_i32_1 = arith.constant 0 : i32
    return %c0_i32, %c0_i32_0 : i32, i32
  }
  func.func @transform_3(%arg0: i32) -> (i32, i32) {
    %c0_i32 = arith.constant 0 : i32
    %c0_i32_0 = arith.constant 0 : i32
    %c0_i32_1 = arith.constant 0 : i32
    return %c0_i32, %c0_i32_0 : i32, i32
  }
  func.func @transform_4(%arg0: i32) -> (i32, i32) {
    %c0_i32 = arith.constant 0 : i32
    %c0_i32_0 = arith.constant 0 : i32
    %c0_i32_1 = arith.constant 0 : i32
    return %c0_i32, %c0_i32_0 : i32, i32
  }
  func.func @transform_5(%arg0: i32) -> (i32, i32) {
    %c0_i32 = arith.constant 0 : i32
    %c0_i32_0 = arith.constant 0 : i32
    return %c0_i32, %arg0 : i32, i32
  }
}

</mosaic_0001>

<llo_original>
// kernel: tpu_custom_call.1
$region0: #{tpu_custom_call.1}
  #allocation0 [shape = 'u32[]', space=smem, size = 0x4, offset = 0x4, fixed_abs, tag = 'smem constant byte address 0x4 - core index']
  #allocation1 [shape = 'u32[144,128]{1,0:T(1,128)}', space=vmem, size = 0x12000, scoped, tag = 'internal scratch']
  #allocation2 [shape = 'f32[1,1]{1,0:T(1,128)S(6)}', space=smem, size = 0x200, scoped, tag = 'scoped memory for tpu_custom_call.1']
  %s0 = inlined_call_operand.vmem [shape: f32[1,128], index: 0, kind: input, shape index: {}]
  %s1 = inlined_call_operand.vmem [shape: f32[128,1], index: 1, kind: input, shape index: {}]
  %s2 = inlined_call_operand.vmem [shape: f32[128,1], index: 2, kind: input, shape index: {}]
  %s3 = inlined_call_operand.vmem [shape: f32[128,1], index: 3, kind: input, shape index: {}]
  %s4 = inlined_call_operand.<no memory space> [shape: f32[1,1], index: 4, kind: input, shape index: {}]
  %s5 = inlined_call_operand.hbm [shape: f32[1,128], index: 5, kind: output, shape index: {}]
  %s6 = sld [smem:[#allocation0]]
  $region30: #{tpu_custom_call.1} parent=0
    _
  %s8 = ssub.s32 1, %s6
  %s9 = scalar_select 0, %s8, %s6
  %10 = sst [smem:[#allocation2]] %s4
  $region1: #{tpu_custom_call.1} parent=0
    #allocation3 [shape = 'u8[512]{0}', space=vmem, size = 0x400, scoped, tag = 'output window, operand 0, single buffered']
    #allocation4 [shape = 's32[1]{0}', space=sflag, size = 0x4, scoped, tag = 'scoped memory for tpu_custom_call.1']
    %11 = vsyncpa [#allocation4], 0
    // Predicated region
    $region2: #{tpu_custom_call.1} parent=1 // pred_check
      _
    $region3: #{tpu_custom_call.1} parent=1 // pred_check_branch
      %13 = sbr.rel (0) target = $region5
    $region4: #{tpu_custom_call.1} parent=1 // pred_region
      _
    $region5: #{tpu_custom_call.1} parent=1 // pred_fallthru
      _
    // Predicated region
    $region6: #{tpu_custom_call.1} parent=1 // pred_check
      _
    $region7: #{tpu_custom_call.1} parent=1 // pred_check_branch
      %15 = sbr.rel (0) target = $region9
    $region8: #{tpu_custom_call.1} parent=1 // pred_region
      _
    $region9: #{tpu_custom_call.1} parent=1 // pred_fallthru
      _
    // Predicated region
    $region10: #{tpu_custom_call.1} parent=1 // pred_check
      _
    $region11: #{tpu_custom_call.1} parent=1 // pred_check_branch
      %17 = sbr.rel (0) target = $region13
    $region12: #{tpu_custom_call.1} parent=1 // pred_region
      _
    $region13: #{tpu_custom_call.1} parent=1 // pred_fallthru
      _
    // Predicated region
    $region14: #{tpu_custom_call.1} parent=1 // pred_check
      _
    $region15: #{tpu_custom_call.1} parent=1 // pred_check_branch
      %19 = sbr.rel (0) target = $region17
    $region16: #{tpu_custom_call.1} parent=1 // pred_region
      _
    $region17: #{tpu_custom_call.1} parent=1 // pred_fallthru
      _
    // Predicated region
    $region18: #{tpu_custom_call.1} parent=1 // pred_check
      _
    $region19: #{tpu_custom_call.1} parent=1 // pred_check_branch
      %21 = sbr.rel (0) target = $region21
    $region20: #{tpu_custom_call.1} parent=1 // pred_region
      _
    $region21: #{tpu_custom_call.1} parent=1 // pred_fallthru
      _
    %v22 = vld [vmem:[%s0] sm:$0x1]
    %v23 = vld [vmem:[%s1] sm:$0xff]
    %v24 = vld [vmem:[%s1 + $0x8] sm:$0xff]
    %v25 = vld [vmem:[%s1 + $0x10] sm:$0xff]
    %v26 = vld [vmem:[%s1 + $0x18] sm:$0xff]
    %v27 = vld [vmem:[%s1 + $0x20] sm:$0xff]
    %v28 = vld [vmem:[%s1 + $0x28] sm:$0xff]
    %v29 = vld [vmem:[%s1 + $0x30] sm:$0xff]
    %v30 = vld [vmem:[%s1 + $0x38] sm:$0xff]
    %v31 = vld [vmem:[%s1 + $0x40] sm:$0xff]
    %v32 = vld [vmem:[%s1 + $0x48] sm:$0xff]
    %v33 = vld [vmem:[%s1 + $0x50] sm:$0xff]
    %v34 = vld [vmem:[%s1 + $0x58] sm:$0xff]
    %v35 = vld [vmem:[%s1 + $0x60] sm:$0xff]
    %v36 = vld [vmem:[%s1 + $0x68] sm:$0xff]
    %v37 = vld [vmem:[%s1 + $0x70] sm:$0xff]
    %v38 = vld [vmem:[%s1 + $0x78] sm:$0xff]
    %40 = vset.pattern.permute.xlu0 0
    %41 = vperm.xlu0 %40, %v23
    %v42 = vpop.permute.xlu0 %41
    %45 = vset.pattern.permute.xlu0 0
    %46 = vperm.xlu0 %45, %v24
    %v47 = vpop.permute.xlu0 %46
    %50 = vset.pattern.permute.xlu0 0
    %51 = vperm.xlu0 %50, %v25
    %v52 = vpop.permute.xlu0 %51
    %55 = vset.pattern.permute.xlu0 0
    %56 = vperm.xlu0 %55, %v26
    %v57 = vpop.permute.xlu0 %56
    %60 = vset.pattern.permute.xlu0 0
    %61 = vperm.xlu0 %60, %v27
    %v62 = vpop.permute.xlu0 %61
    %65 = vset.pattern.permute.xlu0 0
    %66 = vperm.xlu0 %65, %v28
    %v67 = vpop.permute.xlu0 %66
    %70 = vset.pattern.permute.xlu0 0
    %71 = vperm.xlu0 %70, %v29
    %v72 = vpop.permute.xlu0 %71
    %75 = vset.pattern.permute.xlu0 0
    %76 = vperm.xlu0 %75, %v30
    %v77 = vpop.permute.xlu0 %76
    %80 = vset.pattern.permute.xlu0 0
    %81 = vperm.xlu0 %80, %v31
    %v82 = vpop.permute.xlu0 %81
    %85 = vset.pattern.permute.xlu0 0
    %86 = vperm.xlu0 %85, %v32
    %v87 = vpop.permute.xlu0 %86
    %90 = vset.pattern.permute.xlu0 0
    %91 = vperm.xlu0 %90, %v33
    %v92 = vpop.permute.xlu0 %91
    %95 = vset.pattern.permute.xlu0 0
    %96 = vperm.xlu0 %95, %v34
    %v97 = vpop.permute.xlu0 %96
    %100 = vset.pattern.permute.xlu0 0
    %101 = vperm.xlu0 %100, %v35
    %v102 = vpop.permute.xlu0 %101
    %105 = vset.pattern.permute.xlu0 0
    %106 = vperm.xlu0 %105, %v36
    %v107 = vpop.permute.xlu0 %106
    %110 = vset.pattern.permute.xlu0 0
    %111 = vperm.xlu0 %110, %v37
    %v112 = vpop.permute.xlu0 %111
    %115 = vset.pattern.permute.xlu0 0
    %116 = vperm.xlu0 %115, %v38
    %v117 = vpop.permute.xlu0 %116
    %v120 = vlaneseq
    %v121 = vshrl.u32 %v120, 7
    %v122 = vsub.s32 0, %v121
    %v123 = vrot.slane %v22, %v122
    %v125 = vmul.f32 %v42, %v123
    %v126 = vmul.f32 %v47, %v123
    %v127 = vmul.f32 %v52, %v123
    %v128 = vmul.f32 %v57, %v123
    %v129 = vmul.f32 %v62, %v123
    %v130 = vmul.f32 %v67, %v123
    %v131 = vmul.f32 %v72, %v123
    %v132 = vmul.f32 %v77, %v123
    %v133 = vmul.f32 %v82, %v123
    %v134 = vmul.f32 %v87, %v123
    %v135 = vmul.f32 %v92, %v123
    %v136 = vmul.f32 %v97, %v123
    %v137 = vmul.f32 %v102, %v123
    %v138 = vmul.f32 %v107, %v123
    %v139 = vmul.f32 %v112, %v123
    %v140 = vmul.f32 %v117, %v123
    %v141 = vld [vmem:[%s2] sm:$0xff]
    %v142 = vld [vmem:[%s2 + $0x8] sm:$0xff]
    %v143 = vld [vmem:[%s2 + $0x10] sm:$0xff]
    %v144 = vld [vmem:[%s2 + $0x18] sm:$0xff]
    %v145 = vld [vmem:[%s2 + $0x20] sm:$0xff]
    %v146 = vld [vmem:[%s2 + $0x28] sm:$0xff]
    %v147 = vld [vmem:[%s2 + $0x30] sm:$0xff]
    %v148 = vld [vmem:[%s2 + $0x38] sm:$0xff]
    %v149 = vld [vmem:[%s2 + $0x40] sm:$0xff]
    %v150 = vld [vmem:[%s2 + $0x48] sm:$0xff]
    %v151 = vld [vmem:[%s2 + $0x50] sm:$0xff]
    %v152 = vld [vmem:[%s2 + $0x58] sm:$0xff]
    %v153 = vld [vmem:[%s2 + $0x60] sm:$0xff]
    %v154 = vld [vmem:[%s2 + $0x68] sm:$0xff]
    %v155 = vld [vmem:[%s2 + $0x70] sm:$0xff]
    %v156 = vld [vmem:[%s2 + $0x78] sm:$0xff]
    %158 = vset.pattern.permute.xlu0 0
    %159 = vperm.xlu0 %158, %v141
    %v160 = vpop.permute.xlu0 %159
    %163 = vset.pattern.permute.xlu0 0
    %164 = vperm.xlu0 %163, %v142
    %v165 = vpop.permute.xlu0 %164
    %168 = vset.pattern.permute.xlu0 0
    %169 = vperm.xlu0 %168, %v143
    %v170 = vpop.permute.xlu0 %169
    %173 = vset.pattern.permute.xlu0 0
    %174 = vperm.xlu0 %173, %v144
    %v175 = vpop.permute.xlu0 %174
    %178 = vset.pattern.permute.xlu0 0
    %179 = vperm.xlu0 %178, %v145
    %v180 = vpop.permute.xlu0 %179
    %183 = vset.pattern.permute.xlu0 0
    %184 = vperm.xlu0 %183, %v146
    %v185 = vpop.permute.xlu0 %184
    %188 = vset.pattern.permute.xlu0 0
    %189 = vperm.xlu0 %188, %v147
    %v190 = vpop.permute.xlu0 %189
    %193 = vset.pattern.permute.xlu0 0
    %194 = vperm.xlu0 %193, %v148
    %v195 = vpop.permute.xlu0 %194
    %198 = vset.pattern.permute.xlu0 0
    %199 = vperm.xlu0 %198, %v149
    %v200 = vpop.permute.xlu0 %199
    %203 = vset.pattern.permute.xlu0 0
    %204 = vperm.xlu0 %203, %v150
    %v205 = vpop.permute.xlu0 %204
    %208 = vset.pattern.permute.xlu0 0
    %209 = vperm.xlu0 %208, %v151
    %v210 = vpop.permute.xlu0 %209
    %213 = vset.pattern.permute.xlu0 0
    %214 = vperm.xlu0 %213, %v152
    %v215 = vpop.permute.xlu0 %214
    %218 = vset.pattern.permute.xlu0 0
    %219 = vperm.xlu0 %218, %v153
    %v220 = vpop.permute.xlu0 %219
    %223 = vset.pattern.permute.xlu0 0
    %224 = vperm.xlu0 %223, %v154
    %v225 = vpop.permute.xlu0 %224
    %228 = vset.pattern.permute.xlu0 0
    %229 = vperm.xlu0 %228, %v155
    %v230 = vpop.permute.xlu0 %229
    %233 = vset.pattern.permute.xlu0 0
    %234 = vperm.xlu0 %233, %v156
    %v235 = vpop.permute.xlu0 %234
    %v237 = vadd.f32 %v125, %v160
    %v238 = vadd.f32 %v126, %v165
    %v239 = vadd.f32 %v127, %v170
    %v240 = vadd.f32 %v128, %v175
    %v241 = vadd.f32 %v129, %v180
    %v242 = vadd.f32 %v130, %v185
    %v243 = vadd.f32 %v131, %v190
    %v244 = vadd.f32 %v132, %v195
    %v245 = vadd.f32 %v133, %v200
    %v246 = vadd.f32 %v134, %v205
    %v247 = vadd.f32 %v135, %v210
    %v248 = vadd.f32 %v136, %v215
    %v249 = vadd.f32 %v137, %v220
    %v250 = vadd.f32 %v138, %v225
    %v251 = vadd.f32 %v139, %v230
    %v252 = vadd.f32 %v140, %v235
    %v253 = vmax.f32 %v237, 0.0
    %v254 = vmax.f32 %v238, 0.0
    %v255 = vmax.f32 %v239, 0.0
    %v256 = vmax.f32 %v240, 0.0
    %v257 = vmax.f32 %v241, 0.0
    %v258 = vmax.f32 %v242, 0.0
    %v259 = vmax.f32 %v243, 0.0
    %v260 = vmax.f32 %v244, 0.0
    %v261 = vmax.f32 %v245, 0.0
    %v262 = vmax.f32 %v246, 0.0
    %v263 = vmax.f32 %v247, 0.0
    %v264 = vmax.f32 %v248, 0.0
    %v265 = vmax.f32 %v249, 0.0
    %v266 = vmax.f32 %v250, 0.0
    %v267 = vmax.f32 %v251, 0.0
    %v268 = vmax.f32 %v252, 0.0
    %v269 = vld [vmem:[%s3] sm:$0xff]
    %v270 = vld [vmem:[%s3 + $0x8] sm:$0xff]
    %v271 = vld [vmem:[%s3 + $0x10] sm:$0xff]
    %v272 = vld [vmem:[%s3 + $0x18] sm:$0xff]
    %v273 = vld [vmem:[%s3 + $0x20] sm:$0xff]
    %v274 = vld [vmem:[%s3 + $0x28] sm:$0xff]
    %v275 = vld [vmem:[%s3 + $0x30] sm:$0xff]
    %v276 = vld [vmem:[%s3 + $0x38] sm:$0xff]
    %v277 = vld [vmem:[%s3 + $0x40] sm:$0xff]
    %v278 = vld [vmem:[%s3 + $0x48] sm:$0xff]
    %v279 = vld [vmem:[%s3 + $0x50] sm:$0xff]
    %v280 = vld [vmem:[%s3 + $0x58] sm:$0xff]
    %v281 = vld [vmem:[%s3 + $0x60] sm:$0xff]
    %v282 = vld [vmem:[%s3 + $0x68] sm:$0xff]
    %v283 = vld [vmem:[%s3 + $0x70] sm:$0xff]
    %v284 = vld [vmem:[%s3 + $0x78] sm:$0xff]
    %286 = vset.pattern.permute.xlu0 0
    %287 = vperm.xlu0 %286, %v269
    %v288 = vpop.permute.xlu0 %287
    %291 = vset.pattern.permute.xlu0 0
    %292 = vperm.xlu0 %291, %v270
    %v293 = vpop.permute.xlu0 %292
    %296 = vset.pattern.permute.xlu0 0
    %297 = vperm.xlu0 %296, %v271
    %v298 = vpop.permute.xlu0 %297
    %301 = vset.pattern.permute.xlu0 0
    %302 = vperm.xlu0 %301, %v272
    %v303 = vpop.permute.xlu0 %302
    %306 = vset.pattern.permute.xlu0 0
    %307 = vperm.xlu0 %306, %v273
    %v308 = vpop.permute.xlu0 %307
    %311 = vset.pattern.permute.xlu0 0
    %312 = vperm.xlu0 %311, %v274
    %v313 = vpop.permute.xlu0 %312
    %316 = vset.pattern.permute.xlu0 0
    %317 = vperm.xlu0 %316, %v275
    %v318 = vpop.permute.xlu0 %317
    %321 = vset.pattern.permute.xlu0 0
    %322 = vperm.xlu0 %321, %v276
    %v323 = vpop.permute.xlu0 %322
    %326 = vset.pattern.permute.xlu0 0
    %327 = vperm.xlu0 %326, %v277
    %v328 = vpop.permute.xlu0 %327
    %331 = vset.pattern.permute.xlu0 0
    %332 = vperm.xlu0 %331, %v278
    %v333 = vpop.permute.xlu0 %332
    %336 = vset.pattern.permute.xlu0 0
    %337 = vperm.xlu0 %336, %v279
    %v338 = vpop.permute.xlu0 %337
    %341 = vset.pattern.permute.xlu0 0
    %342 = vperm.xlu0 %341, %v280
    %v343 = vpop.permute.xlu0 %342
    %346 = vset.pattern.permute.xlu0 0
    %347 = vperm.xlu0 %346, %v281
    %v348 = vpop.permute.xlu0 %347
    %351 = vset.pattern.permute.xlu0 0
    %352 = vperm.xlu0 %351, %v282
    %v353 = vpop.permute.xlu0 %352
    %356 = vset.pattern.permute.xlu0 0
    %357 = vperm.xlu0 %356, %v283
    %v358 = vpop.permute.xlu0 %357
    %361 = vset.pattern.permute.xlu0 0
    %362 = vperm.xlu0 %361, %v284
    %v363 = vpop.permute.xlu0 %362
    %v365 = vmul.f32 %v253, %v288
    %v366 = vmul.f32 %v254, %v293
    %v367 = vmul.f32 %v255, %v298
    %v368 = vmul.f32 %v256, %v303
    %v369 = vmul.f32 %v257, %v308
    %v370 = vmul.f32 %v258, %v313
    %v371 = vmul.f32 %v259, %v318
    %v372 = vmul.f32 %v260, %v323
    %v373 = vmul.f32 %v261, %v328
    %v374 = vmul.f32 %v262, %v333
    %v375 = vmul.f32 %v263, %v338
    %v376 = vmul.f32 %v264, %v343
    %v377 = vmul.f32 %v265, %v348
    %v378 = vmul.f32 %v266, %v353
    %v379 = vmul.f32 %v267, %v358
    %v380 = vmul.f32 %v268, %v363
    %v381 = vadd.f32 %v365, %v366
    %v382 = vadd.f32 %v381, %v367
    %v383 = vadd.f32 %v382, %v368
    %v384 = vadd.f32 %v383, %v369
    %v385 = vadd.f32 %v384, %v370
    %v386 = vadd.f32 %v385, %v371
    %v387 = vadd.f32 %v386, %v372
    %v388 = vadd.f32 %v387, %v373
    %v389 = vadd.f32 %v388, %v374
    %v390 = vadd.f32 %v389, %v375
    %v391 = vadd.f32 %v390, %v376
    %v392 = vadd.f32 %v391, %v377
    %v393 = vadd.f32 %v392, %v378
    %v394 = vadd.f32 %v393, %v379
    %v395 = vadd.f32 %v394, %v380
    %v396 = vrot.slane %v395, 4
    %v397 = vadd.f32 %v395, %v396
    %v398 = vrot.slane %v397, 2
    %v399 = vadd.f32 %v397, %v398
    %v400 = vrot.slane %v399, 1
    %v401 = vadd.f32 %v399, %v400
    %s402 = sld [smem:[#allocation2]]
    %v403 = vstv %s402
    %v404 = vadd.f32 %v401, %v403
    %405 = vst [vmem:[#allocation3] sm:$0x1] %v404
    // Predicated region
    $region22: #{tpu_custom_call.1} parent=1 // pred_check
      _
    $region23: #{tpu_custom_call.1} parent=1 // pred_check_branch
      %407 = sbr.rel (0) target = $region25
    $region24: #{tpu_custom_call.1} parent=1 // pred_region
      %s409 = ssub.s32 16, 16
      %410 = vsyncadd [#allocation4], %s409
      %s412 = sshll.u32 [#allocation3], 4
      %s413 = int_to_ptr.vmem [resolvable:$true] %s412
      %415 = dma.vmem_to_hbm [thread:$0]  %s413, 16, %s5, [#allocation4]
    $region25: #{tpu_custom_call.1} parent=1 // pred_fallthru
      _
    // Predicated region
    $region26: #{tpu_custom_call.1} parent=1 // pred_check
      _
    $region27: #{tpu_custom_call.1} parent=1 // pred_check_branch
      %417 = sbr.rel (0) target = $region29
    $region28: #{tpu_custom_call.1} parent=1 // pred_region
      %418 = dma.done [#allocation4], 16
    $region29: #{tpu_custom_call.1} parent=1 // pred_fallthru
      _
    %419 = vsyncpa [#allocation4], 1

</llo_original>
